<compile_context>
chip_gen: v7x
topology: tpu7x:2x2x1
jax: 0.10.0
libtpu: 0.0.40
codegen_flags: <defaults>
</compile_context>

<pallas_src>
import math

import jax
import jax.numpy as jnp
from jax.experimental import pallas as pl
from jax.experimental.pallas import tpu as pltpu

_LANE_CANDIDATES = (512, 256, 128)   # preferred lane-dense last-dim widths
_PAD_LANE_WIDTH = 512                # fallback width when padding is needed


def _round_up(x, m):
    return ((x + m - 1) // m) * m


def _sublane_multiple(dtype):
    """Packed sublane multiple: 8 for 4-byte, 16 for 2-byte, 32 for 1-byte."""
    itemsize = jnp.dtype(dtype).itemsize
    return max(8, 32 // max(itemsize, 1))


def ar1_calcium_kernel(params_ref, x_ref, h_ref, out_ref):
    """Elementwise AR1 calcium update for one (block_rows, lane_width) tile.

    params_ref : SMEM (3,) float32        -> [decay, gain, bias]
    x_ref      : VMEM (block_rows, lanes) -> spike input tile
    h_ref      : VMEM (block_rows, lanes) -> previous calcium (hidden) tile
    out_ref    : VMEM (block_rows, lanes) -> updated calcium tile
    """
    decay = params_ref[0]
    gain = params_ref[1]
    bias = params_ref[2]
    # Scalars are f32, so the expression promotes to f32; cast back explicitly
    # so non-f32 inputs (e.g. bf16) store cleanly.
    result = h_ref[...] * decay + x_ref[...] * gain + bias
    out_ref[...] = result.astype(out_ref.dtype)


def ar1_calcium(x, hidden, gain, bias, logtau, *, max_block_rows=1024):
    """hidden * (1 - 1/exp(logtau)) + gain * x + bias, via a Pallas TPU kernel."""
    assert x.shape == hidden.shape
    orig_shape = x.shape
    orig_dtype = x.dtype
    total = int(x.size)
    itemsize = jnp.dtype(orig_dtype).itemsize
    sub = _sublane_multiple(orig_dtype)

    # Scalar parameters (match the reference exactly: 1 - 1/exp(logtau)).
    logtau_f32 = jnp.asarray(logtau, jnp.float32)
    decay = 1.0 - 1.0 / jnp.exp(logtau_f32)
    params = jnp.stack([
        decay,
        jnp.asarray(gain, jnp.float32),
        jnp.asarray(bias, jnp.float32),
    ]).astype(jnp.float32)

    # ---- Layout selection: zero-copy when possible -------------------------
    lane_width = None
    for lw in _LANE_CANDIDATES:
        if total % lw == 0:
            lane_width = lw
            break
    if lane_width is None:
        lane_width = _PAD_LANE_WIDTH
        padded_total = _round_up(total, lane_width)
    else:
        padded_total = total
    pad = padded_total - total
    rows = padded_total // lane_width

    def to_slab(a):
        flat = a.reshape(-1)
        if pad:
            flat = jnp.pad(flat, (0, pad))     # tail-pad only (ragged totals)
        return flat.reshape(rows, lane_width)

    x2 = to_slab(x)
    h2 = to_slab(hidden)

    # ---- Block sizing -------------------------------------------------------
    if rows <= sub:
        # Tiny input: single full-extent block (allowed even if rows % sub != 0).
        block_rows = rows
    else:
        # Aim for >=4 grid steps so both v7x TensorCores share the HBM stream,
        # capped at max_block_rows (2 MiB/buffer at 1024x512 f32).
        block_rows = min(max_block_rows, _round_up(pl.cdiv(rows, 4), sub))
    num_blocks = pl.cdiv(rows, block_rows)     # ragged last block is masked

    tile_spec = pl.BlockSpec((block_rows, lane_width), lambda i: (i, 0))

    out2 = pl.pallas_call(
        ar1_calcium_kernel,
        out_shape=jax.ShapeDtypeStruct((rows, lane_width), orig_dtype),
        grid=(num_blocks,),
        in_specs=[
            pl.BlockSpec(memory_space=pltpu.SMEM),  # params (whole array in SMEM)
            tile_spec,                              # x
            tile_spec,                              # hidden
        ],
        out_specs=tile_spec,
        compiler_params=pltpu.CompilerParams(
            dimension_semantics=("parallel",),
            vmem_limit_bytes=32 * 1024 * 1024,
        ),
        cost_estimate=pl.CostEstimate(
            flops=3 * total,
            transcendentals=0,
            bytes_accessed=3 * total * itemsize,
        ),
    )(params, x2, h2)

    if pad:
        return out2.reshape(-1)[:total].reshape(orig_shape)
    return out2.reshape(orig_shape)


if __name__ == "__main__":
    # Deterministic parameters mirroring AR1_Calcium.__init__ defaults:
    #   gain=1.0, bias=0.0, tau=10 (stored as logtau), var=0.1 (unused in forward).
    gain = jnp.float32(1.0)
    bias = jnp.float32(0.0)
    logtau = jnp.float32(math.log(10.0))
    logvar = jnp.float32(math.log(0.1))  # not used in forward

    key = jax.random.PRNGKey(0)
    kx, kh, kx2, kh2, kx3, kh3 = jax.random.split(key, 6)

    def ref_fn(xv, hv):
        return hv * (1.0 - 1.0 / jnp.exp(logtau)) + gain * xv + bias

    # 1) Small example (zero-copy fast path): batch=2, seq=8, neurons=32.
    x = jax.random.normal(kx, (2, 8, 32), dtype=jnp.float32)
    hidden = jax.random.normal(kh, (2, 8, 32), dtype=jnp.float32)
    out = jax.block_until_ready(ar1_calcium(x, hidden, gain, bias, logtau))
    assert out.shape == x.shape and out.dtype == x.dtype
    assert jnp.allclose(out, ref_fn(x, hidden), rtol=1e-6, atol=1e-6)

    # 2) Non-128 last dim but total divisible by 256 (zero-copy, ragged grid).
    x2 = jax.random.normal(kx2, (4, 16, 300), dtype=jnp.float32)
    h2 = jax.random.normal(kh2, (4, 16, 300), dtype=jnp.float32)
    out2 = jax.block_until_ready(ar1_calcium(x2, h2, gain, bias, logtau))
    assert jnp.allclose(out2, ref_fn(x2, h2), rtol=1e-6, atol=1e-6)

    # 3) Ragged total (exercises the tail-pad fallback path).
    x3 = jax.random.normal(kx3, (3, 7, 5), dtype=jnp.float32)
    h3 = jax.random.normal(kh3, (3, 7, 5), dtype=jnp.float32)
    out3 = jax.block_until_ready(ar1_calcium(x3, h3, gain, bias, logtau))
    assert jnp.allclose(out3, ref_fn(x3, h3), rtol=1e-6, atol=1e-6)

    # 4) bf16 inputs (exercises dtype-safe store path).
    xb = x.astype(jnp.bfloat16)
    hb = hidden.astype(jnp.bfloat16)
    outb = jax.block_until_ready(ar1_calcium(xb, hb, gain, bias, logtau))
    assert outb.dtype == jnp.bfloat16
    refb = ref_fn(xb.astype(jnp.float32), hb.astype(jnp.float32))
    assert jnp.allclose(outb.astype(jnp.float32), refb, rtol=2e-2, atol=2e-2)

    print("KERNEL_OK")
</pallas_src>

<mosaic_0001>
module attributes {stable_mosaic.version = 11 : i64} {
  func.func @ar1_calcium_kernel(%arg0: i32, %arg1: memref<3xf32, #tpu.memory_space<smem>>, %arg2: memref<1x512xf32, #tpu.memory_space<vmem>>, %arg3: memref<1x512xf32, #tpu.memory_space<vmem>>, %arg4: memref<1x512xf32, #tpu.memory_space<vmem>>) attributes {dimension_semantics = [#tpu.dimension_semantics<parallel>], iteration_bounds = array<i64: 1>, scalar_prefetch = 0 : i64, scratch_operands = 0 : i64, tpu.core_type = #tpu.core_type<tc>, window_params = [{transform_indices = @transform_0, window_bounds = array<i64: 3>}, {transform_indices = @transform_1, window_bounds = array<i64: 1, 512>}, {transform_indices = @transform_2, window_bounds = array<i64: 1, 512>}, {transform_indices = @transform_3, window_bounds = array<i64: 1, 512>}]} {
    %c0 = arith.constant 0 : index
    %0 = memref.load %arg1[%c0] : memref<3xf32, #tpu.memory_space<smem>>
    %c1 = arith.constant 1 : index
    %1 = memref.load %arg1[%c1] : memref<3xf32, #tpu.memory_space<smem>>
    %c2 = arith.constant 2 : index
    %2 = memref.load %arg1[%c2] : memref<3xf32, #tpu.memory_space<smem>>
    %c0_0 = arith.constant 0 : index
    %c0_1 = arith.constant 0 : index
    %3 = vector.load %arg3[%c0_0, %c0_1] : memref<1x512xf32, #tpu.memory_space<vmem>>, vector<1x512xf32>
    %4 = vector.broadcast %0 : f32 to vector<1x512xf32>
    %5 = arith.mulf %3, %4 : vector<1x512xf32>
    %c0_2 = arith.constant 0 : index
    %c0_3 = arith.constant 0 : index
    %6 = vector.load %arg2[%c0_2, %c0_3] : memref<1x512xf32, #tpu.memory_space<vmem>>, vector<1x512xf32>
    %7 = vector.broadcast %1 : f32 to vector<1x512xf32>
    %8 = arith.mulf %6, %7 : vector<1x512xf32>
    %9 = arith.addf %5, %8 : vector<1x512xf32>
    %10 = vector.broadcast %2 : f32 to vector<1x512xf32>
    %11 = arith.addf %9, %10 : vector<1x512xf32>
    %c0_4 = arith.constant 0 : index
    %c0_5 = arith.constant 0 : index
    %12 = vector.load %arg4[%c0_4, %c0_5] : memref<1x512xf32, #tpu.memory_space<vmem>>, vector<1x512xf32>
    tpu.vector_store %arg4[%c0_4, %c0_5], %11 {strides = array<i32>} : memref<1x512xf32, #tpu.memory_space<vmem>>, vector<1x512xf32>,
    return
  }
  func.func @transform_0(%arg0: i32) -> i32 {
    %c0_i32 = arith.constant 0 : i32
    %c0_i32_0 = arith.constant 0 : i32
    return %c0_i32 : i32
  }
  func.func @transform_1(%arg0: i32) -> (i32, i32) {
    %c0_i32 = arith.constant 0 : i32
    %c0_i32_0 = arith.constant 0 : i32
    return %arg0, %c0_i32 : i32, i32
  }
  func.func @transform_2(%arg0: i32) -> (i32, i32) {
    %c0_i32 = arith.constant 0 : i32
    %c0_i32_0 = arith.constant 0 : i32
    return %arg0, %c0_i32 : i32, i32
  }
  func.func @transform_3(%arg0: i32) -> (i32, i32) {
    %c0_i32 = arith.constant 0 : i32
    %c0_i32_0 = arith.constant 0 : i32
    return %arg0, %c0_i32 : i32, i32
  }
}

</mosaic_0001>

<llo_original>
// kernel: tpu_custom_call.1
$region0: #{tpu_custom_call.1}
  #allocation0 [shape = 'u32[]', space=smem, size = 0x4, offset = 0x4, fixed_abs, tag = 'smem constant byte address 0x4 - core index']
  #allocation1 [shape = 'u32[144,128]{1,0:T(1,128)}', space=vmem, size = 0x12000, scoped, tag = 'internal scratch']
  %s0 = inlined_call_operand.hbm [shape: f32[3], index: 0, kind: input, shape index: {}]
  %s1 = inlined_call_operand.hbm [shape: f32[1,512], index: 1, kind: input, shape index: {}]
  %s2 = inlined_call_operand.vmem [shape: f32[1,512], index: 2, kind: input, shape index: {}]
  %s3 = inlined_call_operand.hbm [shape: f32[1,512], index: 3, kind: output, shape index: {}]
  %s4 = sld [smem:[#allocation0]]
  $region30: #{tpu_custom_call.1} parent=0
    _
  %s6 = ssub.s32 1, %s4
  %s7 = scalar_select 0, %s6, %s4
  $region1: #{tpu_custom_call.1} parent=0
    #allocation2 [shape = 'u8[512]{0}', space=smem, size = 0x200, scoped, tag = 'input window, operand 0, single buffered']
    #allocation3 [shape = 's32[1]{0}', space=sflag, size = 0x4, scoped, tag = 'scoped memory for tpu_custom_call.1']
    #allocation4 [shape = 's32[1]{0}', space=sflag, size = 0x4, scoped, tag = 'scoped memory for tpu_custom_call.1']
    #allocation5 [shape = 's32[1]{0}', space=sflag, size = 0x4, scoped, tag = 'scoped memory for tpu_custom_call.1']
    #allocation6 [shape = 'u8[2048]{0}', space=vmem, size = 0x800, scoped, tag = 'input window, operand 1, single buffered']
    #allocation7 [shape = 'u8[2048]{0}', space=vmem, size = 0x800, scoped, tag = 'output window, operand 0, single buffered']
    %8 = vsyncpa [#allocation5], 0
    %9 = vsyncpa [#allocation3], 0
    %10 = vsyncpa [#allocation4], 0
    // Predicated region
    $region2: #{tpu_custom_call.1} parent=1 // pred_check
      _
    $region3: #{tpu_custom_call.1} parent=1 // pred_check_branch
      %12 = sbr.rel (0) target = $region5
    $region4: #{tpu_custom_call.1} parent=1 // pred_region
      %s14 = ssub.s32 16, 16
      %15 = vsyncadd [#allocation5], %s14
      %18 = dma.hbm_to_smem %s0, 16, [#allocation2], [#allocation5]
    $region5: #{tpu_custom_call.1} parent=1 // pred_fallthru
      _
    // Predicated region
    $region6: #{tpu_custom_call.1} parent=1 // pred_check
      _
    $region7: #{tpu_custom_call.1} parent=1 // pred_check_branch
      %20 = sbr.rel (0) target = $region9
    $region8: #{tpu_custom_call.1} parent=1 // pred_region
      %s22 = ssub.s32 64, 64
      %23 = vsyncadd [#allocation3], %s22
      %s25 = sshll.u32 [#allocation6], 4
      %s26 = int_to_ptr.vmem [resolvable:$true] %s25
      %28 = dma.hbm_to_vmem [thread:$0]  %s1, 64, %s26, [#allocation3]
    $region9: #{tpu_custom_call.1} parent=1 // pred_fallthru
      _
    // Predicated region
    $region10: #{tpu_custom_call.1} parent=1 // pred_check
      _
    $region11: #{tpu_custom_call.1} parent=1 // pred_check_branch
      %30 = sbr.rel (0) target = $region13
    $region12: #{tpu_custom_call.1} parent=1 // pred_region
      _
    $region13: #{tpu_custom_call.1} parent=1 // pred_fallthru
      _
    // Predicated region
    $region14: #{tpu_custom_call.1} parent=1 // pred_check
      _
    $region15: #{tpu_custom_call.1} parent=1 // pred_check_branch
      %32 = sbr.rel (0) target = $region17
    $region16: #{tpu_custom_call.1} parent=1 // pred_region
      %33 = dma.done [#allocation5], 16
    $region17: #{tpu_custom_call.1} parent=1 // pred_fallthru
      _
    // Predicated region
    $region18: #{tpu_custom_call.1} parent=1 // pred_check
      _
    $region19: #{tpu_custom_call.1} parent=1 // pred_check_branch
      %35 = sbr.rel (0) target = $region21
    $region20: #{tpu_custom_call.1} parent=1 // pred_region
      %36 = dma.done [#allocation3], 64
    $region21: #{tpu_custom_call.1} parent=1 // pred_fallthru
      _
    %37 = sfence
    %s38 = sld [smem:[#allocation2]]
    %s39 = sld [smem:[#allocation2 + $0x1]]
    %s40 = sld [smem:[#allocation2 + $0x2]]
    %v41 = vld [vmem:[%s2] sm:$0xf]
    %v42 = vstv %s38
    %v43 = vmul.f32 %v41, %v42
    %v44 = vld [vmem:[#allocation6] sm:$0xf]
    %v45 = vstv %s39
    %v46 = vmul.f32 %v44, %v45
    %v47 = vadd.f32 %v43, %v46
    %v48 = vstv %s40
    %v49 = vadd.f32 %v47, %v48
    %v50 = vlaneseq
    %vm51 = vcmp.ge.s32.totalorder %v50, 0
    %vm52 = vcmp.lt.s32.totalorder %v50, 512
    %vm53 = vmand %vm51, %vm52
    %54 = vst.msk [vmem:[#allocation7] sm:$0xf] %vm53, %v49
    // Predicated region
    $region22: #{tpu_custom_call.1} parent=1 // pred_check
      _
    $region23: #{tpu_custom_call.1} parent=1 // pred_check_branch
      %56 = sbr.rel (0) target = $region25
    $region24: #{tpu_custom_call.1} parent=1 // pred_region
      %s58 = ssub.s32 64, 64
      %59 = vsyncadd [#allocation4], %s58
      %s61 = sshll.u32 [#allocation7], 4
      %s62 = int_to_ptr.vmem [resolvable:$true] %s61
      %64 = dma.vmem_to_hbm [thread:$0]  %s62, 64, %s3, [#allocation4]
    $region25: #{tpu_custom_call.1} parent=1 // pred_fallthru
      _
    // Predicated region
    $region26: #{tpu_custom_call.1} parent=1 // pred_check
      _
    $region27: #{tpu_custom_call.1} parent=1 // pred_check_branch
      %66 = sbr.rel (0) target = $region29
    $region28: #{tpu_custom_call.1} parent=1 // pred_region
      %67 = dma.done [#allocation4], 64
    $region29: #{tpu_custom_call.1} parent=1 // pred_fallthru
      _
    %68 = vsyncpa [#allocation3], 1
    %69 = vsyncpa [#allocation4], 1
    %70 = vsyncpa [#allocation5], 1

</llo_original>
